<compile_context>
chip_gen: v7x
topology: tpu7x:2x2x1
jax: 0.10.0
libtpu: 0.0.40
codegen_flags: <defaults>
</compile_context>

<pallas_src>
import functools

import jax
import jax.numpy as jnp
from jax.experimental import pallas as pl
from jax.experimental.pallas import tpu as pltpu


def _round_up(x, m):
    return ((x + m - 1) // m) * m


def _plan_tiles(M, K, Nout, tm, tn, tk, m_gran=16):
    """Clamp tile sizes to (rounded-up) extents and compute padded dims."""
    tm_e = min(tm, _round_up(M, m_gran))
    tk_e = min(tk, _round_up(K, 128))
    tn_e = min(tn, _round_up(Nout, 128))
    Mp = _round_up(M, tm_e)
    Kp = _round_up(K, tk_e)
    Np = _round_up(Nout, tn_e)
    # Megacore: keep >= 2 i-blocks when there is enough M to split (v7x has 2 TCs).
    while Mp // tm_e < 2 and tm_e > 256:
        tm_e = max(m_gran, _round_up(tm_e // 2, m_gran))
        Mp = _round_up(M, tm_e)
    return tm_e, tk_e, tn_e, Mp, Kp, Np


# ----------------------------------------------------------------------------
# Pallas kernel: tiled matmul + bias   (grid = (M/tm, Nout/tn, K/tk), K last)
# ----------------------------------------------------------------------------
def _linear_bias_kernel(x_ref, w_ref, b_ref, o_ref, acc_ref, *, tk, w_resident):
    k = pl.program_id(2)

    @pl.when(k == 0)
    def _():
        acc_ref[...] = jnp.zeros_like(acc_ref)

    x = x_ref[...]
    if x.dtype != jnp.bfloat16:          # e.g. low-precision edge-count storage
        x = x.astype(jnp.bfloat16)       # VPU cast; portable (v7x MXU has no int8)

    if w_resident:
        # W is fully resident in VMEM (DMA'd once per j-block); take the K panel.
        start = pl.multiple_of(k * tk, tk)
        w = w_ref[pl.ds(start, tk), :]
    else:
        w = w_ref[...]

    acc_ref[...] += jnp.dot(x, w, preferred_element_type=jnp.float32)

    @pl.when(k == pl.num_programs(2) - 1)
    def _():
        o_ref[...] = (acc_ref[...] + b_ref[...].astype(jnp.float32)
                      ).astype(o_ref.dtype)


def linear_pallas(x, w_t, bias, *, tm=1024, tn=128, tk=2048,
                  compute_dtype=jnp.bfloat16, out_dtype=jnp.float32):
    """y = x @ w_t + bias.

    x: (M, K) — may already be padded / in a low-precision storage dtype.
    w_t: (K2, Nout) pre-transposed Linear weight (K >= K2; extra K cols of x
    must be zero).  bias: (Nout,).  MXU operands are bf16, accumulation f32.
    """
    M, K = x.shape
    K2, Nout = w_t.shape
    assert K >= K2 and bias.shape == (Nout,)

    tm_e, tk_e, tn_e, Mp, Kp, Np = _plan_tiles(M, K, Nout, tm, tn, tk)

    xp = x
    if xp.dtype != compute_dtype and xp.dtype != jnp.int8:
        xp = xp.astype(compute_dtype)
    if (Mp, Kp) != (M, K):
        xp = jnp.pad(xp, ((0, Mp - M), (0, Kp - K)))

    wp = w_t.astype(compute_dtype) if w_t.dtype != compute_dtype else w_t
    if (Kp, Np) != (K2, Nout):
        wp = jnp.pad(wp, ((0, Kp - K2), (0, Np - Nout)))

    bp = jnp.pad(bias.astype(jnp.float32), (0, Np - Nout)).reshape(1, Np)

    # Keep W fully VMEM-resident when the whole (Kp, tn) panel is small
    # (removes the per-i-block re-stream of W from HBM).
    w_resident = Kp * tn_e * jnp.dtype(compute_dtype).itemsize <= 8 * 1024 * 1024
    w_spec = (pl.BlockSpec((Kp, tn_e), lambda i, j, k: (0, j)) if w_resident
              else pl.BlockSpec((tk_e, tn_e), lambda i, j, k: (k, j)))

    grid = (Mp // tm_e, Np // tn_e, Kp // tk_e)
    n_i, n_j = grid[0], grid[1]

    x_bytes = Mp * Kp * xp.dtype.itemsize * n_j
    w_bytes = Kp * Np * wp.dtype.itemsize * (1 if w_resident else n_i)
    o_bytes = Mp * Np * jnp.dtype(out_dtype).itemsize
    cost = pl.CostEstimate(flops=2 * Mp * Kp * Np, transcendentals=0,
                           bytes_accessed=x_bytes + w_bytes + bp.size * 4 + o_bytes)

    kernel = functools.partial(_linear_bias_kernel, tk=tk_e, w_resident=w_resident)

    out = pl.pallas_call(
        kernel,
        out_shape=jax.ShapeDtypeStruct((Mp, Np), out_dtype),
        grid_spec=pltpu.PrefetchScalarGridSpec(
            num_scalar_prefetch=0,
            grid=grid,
            in_specs=[
                pl.BlockSpec((tm_e, tk_e), lambda i, j, k: (i, k)),  # A tile
                w_spec,                                              # W (resident or blocked)
                pl.BlockSpec((1, tn_e), lambda i, j, k: (0, j)),     # bias
            ],
            out_specs=pl.BlockSpec((tm_e, tn_e), lambda i, j, k: (i, j)),
            scratch_shapes=[pltpu.VMEM((tm_e, tn_e), jnp.float32)],
        ),
        compiler_params=pltpu.CompilerParams(
            dimension_semantics=("parallel", "parallel", "arbitrary"),
            # ~10-26 MiB working set at the default tiles; 48 MiB leaves headroom
            # and stays under v7x's 64 MiB physical VMEM.
            vmem_limit_bytes=48 * 1024 * 1024),
        cost_estimate=cost,
    )(xp, wp, bp)

    return out[:M, :Nout]


# ----------------------------------------------------------------------------
# LINK forward
# ----------------------------------------------------------------------------
def link_forward(edge_index, w_t, bias, *, num_nodes, data_num_nodes=None,
                 tm=1024, tn=128, tk=2048, compute_dtype=jnp.bfloat16):
    """logits = A @ W^T + b, with A the (N, num_nodes) adjacency from edge_index."""
    N = num_nodes if data_num_nodes is None else data_num_nodes
    row, col = edge_index
    row = row - jnp.min(row)                      # matches `row = row - row.min()`
    out_channels = bias.shape[0]

    tm_e, tk_e, tn_e, Mp, Kp, Np = _plan_tiles(N, num_nodes, out_channels, tm, tn, tk)

    # Build the adjacency ONCE, directly in its padded shape and in the MXU
    # compute dtype (single N^2 materialization in HBM).  Duplicate edges sum,
    # matching un-coalesced torch sparse COO matmul; counts are exact in bf16
    # up to 256.
    adj = jnp.zeros((Mp, Kp), compute_dtype).at[row, col].add(
        jnp.ones((), dtype=compute_dtype))
    # TODO(synk): for large sparse graphs, replace the dense adjacency matmul with
    # an edge-driven gather of W rows + segment-sum per destination node
    # (O(E*out) work) via a scalar-prefetch Pallas kernel over sorted edges.
    # TODO(synk): optionally store A as int8 edge counts (halves HBM traffic again)
    # once multiplicities are known to stay below 128; kernel already casts in-VMEM.

    out = linear_pallas(adj, w_t, bias, tm=tm, tn=tn, tk=tk,
                        compute_dtype=compute_dtype)
    return out[:N, :out_channels]


# ----------------------------------------------------------------------------
# Demo / correctness check
# ----------------------------------------------------------------------------
if __name__ == "__main__":
    num_nodes = 64          # -> K dim of the Linear
    out_channels = 32
    num_edges = 128

    key = jax.random.PRNGKey(0)
    ke, kw, kb = jax.random.split(key, 3)

    edge_index = jax.random.randint(ke, (2, num_edges), 0, num_nodes,
                                    dtype=jnp.int32)
    # nn.Linear(num_nodes, out_channels) parameters, weight stored pre-transposed.
    bound = 1.0 / float(jnp.sqrt(jnp.float32(num_nodes)))
    w_t = jax.random.uniform(kw, (num_nodes, out_channels), jnp.float32,
                             -bound, bound)
    b = jax.random.uniform(kb, (out_channels,), jnp.float32, -bound, bound)

    fwd = jax.jit(functools.partial(link_forward, num_nodes=num_nodes))
    logits = fwd(edge_index, w_t, b)
    jax.block_until_ready(logits)

    # Plain-JAX reference using the same bf16-cast MXU operands.
    row = edge_index[0] - jnp.min(edge_index[0])
    col = edge_index[1]
    adj_ref = jnp.zeros((num_nodes, num_nodes), jnp.float32).at[row, col].add(1.0)
    a16 = adj_ref.astype(jnp.bfloat16).astype(jnp.float32)
    w16 = w_t.astype(jnp.bfloat16).astype(jnp.float32)
    logits_ref = a16 @ w16 + b

    assert logits.shape == (num_nodes, out_channels)
    assert logits.dtype == jnp.float32
    assert jnp.allclose(logits, logits_ref, atol=2e-3, rtol=2e-3), \
        float(jnp.max(jnp.abs(logits - logits_ref)))

    print("KERNEL_OK")
</pallas_src>

<mosaic_0001>
module attributes {stable_mosaic.version = 11 : i64} {
  func.func @_linear_bias_kernel(%arg0: i32, %arg1: i32, %arg2: i32, %arg3: memref<64x128xbf16, #tpu.memory_space<vmem>>, %arg4: memref<128x128xbf16, #tpu.memory_space<vmem>>, %arg5: memref<1x128xf32, #tpu.memory_space<vmem>>, %arg6: memref<64x128xf32, #tpu.memory_space<vmem>>, %arg7: memref<64x128xf32, #tpu.memory_space<vmem>>) attributes {dimension_semantics = [#tpu.dimension_semantics<parallel>, #tpu.dimension_semantics<parallel>, #tpu.dimension_semantics<arbitrary>], iteration_bounds = array<i64: 1, 1, 1>, scalar_prefetch = 0 : i64, scratch_operands = 1 : i64, tpu.core_type = #tpu.core_type<tc>, window_params = [{transform_indices = @transform_0, window_bounds = array<i64: 64, 128>}, {transform_indices = @transform_1, window_bounds = array<i64: 128, 128>}, {transform_indices = @transform_2, window_bounds = array<i64: 1, 128>}, {transform_indices = @transform_3, window_bounds = array<i64: 64, 128>}]} {
    %c0_i32 = arith.constant 0 : i32
    %0 = arith.cmpi eq, %arg2, %c0_i32 : i32
    %1 = arith.extui %0 : i1 to i32
    %c0_i32_0 = arith.constant 0 : i32
    %2 = arith.cmpi ne, %1, %c0_i32_0 : i32
    scf.if %2 {
      %cst_9 = arith.constant 0.000000e+00 : f32
      %15 = vector.broadcast %cst_9 : f32 to vector<64x128xf32>
      %c0_10 = arith.constant 0 : index
      %c0_11 = arith.constant 0 : index
      %16 = vector.load %arg7[%c0_10, %c0_11] : memref<64x128xf32, #tpu.memory_space<vmem>>, vector<64x128xf32>
      tpu.vector_store %arg7[%c0_10, %c0_11], %15 {strides = array<i32>} : memref<64x128xf32, #tpu.memory_space<vmem>>, vector<64x128xf32>,
    } else {
    }
    %c0 = arith.constant 0 : index
    %c0_1 = arith.constant 0 : index
    %3 = vector.load %arg3[%c0, %c0_1] : memref<64x128xbf16, #tpu.memory_space<vmem>>, vector<64x128xbf16>
    %c128_i32 = arith.constant 128 : i32
    %4 = arith.muli %arg2, %c128_i32 : i32
    %5 = tpu.assume_multiple %4, 128 : i32
    %6 = arith.index_cast %5 : i32 to index
    %c0_2 = arith.constant 0 : index
    %7 = vector.load %arg4[%6, %c0_2] : memref<128x128xbf16, #tpu.memory_space<vmem>>, vector<128x128xbf16>
    %c0_3 = arith.constant 0 : index
    %c0_4 = arith.constant 0 : index
    %8 = vector.load %arg7[%c0_3, %c0_4] : memref<64x128xf32, #tpu.memory_space<vmem>>, vector<64x128xf32>
    %cst = arith.constant dense<0.000000e+00> : vector<64x128xf32>
    %9 = tpu.matmul %3, %7, %cst {dimension_numbers = #tpu.dot_dimension_numbers<[1], [0], [0], [1], [0, 0, 1, 1], [], []>} : vector<64x128xbf16>, vector<128x128xbf16>, vector<64x128xf32> -> vector<64x128xf32>
    %10 = arith.addf %8, %9 : vector<64x128xf32>
    %c0_5 = arith.constant 0 : index
    %c0_6 = arith.constant 0 : index
    %11 = vector.load %arg7[%c0_5, %c0_6] : memref<64x128xf32, #tpu.memory_space<vmem>>, vector<64x128xf32>
    tpu.vector_store %arg7[%c0_5, %c0_6], %10 {strides = array<i32>} : memref<64x128xf32, #tpu.memory_space<vmem>>, vector<64x128xf32>,
    %c0_i32_7 = arith.constant 0 : i32
    %12 = arith.cmpi eq, %arg2, %c0_i32_7 : i32
    %13 = arith.extui %12 : i1 to i32
    %c0_i32_8 = arith.constant 0 : i32
    %14 = arith.cmpi ne, %13, %c0_i32_8 : i32
    scf.if %14 {
      %c0_9 = arith.constant 0 : index
      %c0_10 = arith.constant 0 : index
      %15 = vector.load %arg7[%c0_9, %c0_10] : memref<64x128xf32, #tpu.memory_space<vmem>>, vector<64x128xf32>
      %c0_11 = arith.constant 0 : index
      %c0_12 = arith.constant 0 : index
      %16 = vector.load %arg5[%c0_11, %c0_12] : memref<1x128xf32, #tpu.memory_space<vmem>>, vector<1x128xf32>
      %17 = vector.broadcast %16 : vector<1x128xf32> to vector<64x128xf32>
      %18 = arith.addf %15, %17 : vector<64x128xf32>
      %c0_13 = arith.constant 0 : index
      %c0_14 = arith.constant 0 : index
      %19 = vector.load %arg6[%c0_13, %c0_14] : memref<64x128xf32, #tpu.memory_space<vmem>>, vector<64x128xf32>
      tpu.vector_store %arg6[%c0_13, %c0_14], %18 {strides = array<i32>} : memref<64x128xf32, #tpu.memory_space<vmem>>, vector<64x128xf32>,
    } else {
    }
    return
  }
  func.func @transform_0(%arg0: i32, %arg1: i32, %arg2: i32) -> (i32, i32) {
    %c0_i32 = arith.constant 0 : i32
    return %arg0, %arg2 : i32, i32
  }
  func.func @transform_1(%arg0: i32, %arg1: i32, %arg2: i32) -> (i32, i32) {
    %c0_i32 = arith.constant 0 : i32
    %c0_i32_0 = arith.constant 0 : i32
    return %c0_i32, %arg1 : i32, i32
  }
  func.func @transform_2(%arg0: i32, %arg1: i32, %arg2: i32) -> (i32, i32) {
    %c0_i32 = arith.constant 0 : i32
    %c0_i32_0 = arith.constant 0 : i32
    return %c0_i32, %arg1 : i32, i32
  }
  func.func @transform_3(%arg0: i32, %arg1: i32, %arg2: i32) -> (i32, i32) {
    %c0_i32 = arith.constant 0 : i32
    return %arg0, %arg1 : i32, i32
  }
}

</mosaic_0001>

<llo_original>
// kernel: link_forward.1
$region0: #{link_forward.1}
  #allocation0 [shape = 'u32[]', space=smem, size = 0x4, offset = 0x4, fixed_abs, tag = 'smem constant byte address 0x4 - core index']
  #allocation1 [shape = 'u32[144,128]{1,0:T(1,128)}', space=vmem, size = 0x12000, scoped, tag = 'internal scratch']
  #allocation2 [shape = 'f32[64,128]{1,0:T(8,128)}', space=vmem, size = 0x8000, scoped, tag = 'scratch operand']
  %s0 = inlined_call_operand.vmem [shape: bf16[64,128], index: 0, kind: input, shape index: {}]
  %s1 = inlined_call_operand.vmem [shape: bf16[128,128], index: 1, kind: input, shape index: {}]
  %s2 = inlined_call_operand.vmem [shape: f32[1,128], index: 2, kind: input, shape index: {}]
  %s3 = inlined_call_operand.vmem [shape: f32[64,128], index: 3, kind: output, shape index: {}]
  %s4 = sld [smem:[#allocation0]]
  $region30: #{link_forward.1} parent=0
    _
  %s6 = ssub.s32 1, %s4
  %s7 = scalar_select 0, %s6, %s4
  // Predicated region
  $region2: #{link_forward.1} parent=0 // pred_check
    _
  $region3: #{link_forward.1} parent=0 // pred_check_branch
    %9 = sbr.rel (0) target = $region5
  $region4: #{link_forward.1} parent=0 // pred_region
    _
  $region5: #{link_forward.1} parent=0 // pred_fallthru
    _
  // Predicated region
  $region6: #{link_forward.1} parent=0 // pred_check
    _
  $region7: #{link_forward.1} parent=0 // pred_check_branch
    %11 = sbr.rel (0) target = $region9
  $region8: #{link_forward.1} parent=0 // pred_region
    _
  $region9: #{link_forward.1} parent=0 // pred_fallthru
    _
  // Predicated region
  $region10: #{link_forward.1} parent=0 // pred_check
    _
  $region11: #{link_forward.1} parent=0 // pred_check_branch
    %13 = sbr.rel (0) target = $region13
  $region12: #{link_forward.1} parent=0 // pred_region
    _
  $region13: #{link_forward.1} parent=0 // pred_fallthru
    _
  %p15 = scmp.eq.s32.totalorder 0, 0
  // Predicated region
  $region14: #{link_forward.1} parent=0 // pred_check
    %p16 = pneg %p15
  $region15: #{link_forward.1} parent=0 // pred_check_branch
    %18 = sbr.rel (%p16) target = $region17
  $region16: #{link_forward.1} parent=0 // pred_region
    %19 = vst [vmem:[#allocation2] sm:$0xff] 0.0
    %20 = vst [vmem:[#allocation2 + $0x8] sm:$0xff] 0.0
    %21 = vst [vmem:[#allocation2 + $0x10] sm:$0xff] 0.0
    %22 = vst [vmem:[#allocation2 + $0x18] sm:$0xff] 0.0
    %23 = vst [vmem:[#allocation2 + $0x20] sm:$0xff] 0.0
    %24 = vst [vmem:[#allocation2 + $0x28] sm:$0xff] 0.0
    %25 = vst [vmem:[#allocation2 + $0x30] sm:$0xff] 0.0
    %26 = vst [vmem:[#allocation2 + $0x38] sm:$0xff] 0.0
  $region17: #{link_forward.1} parent=0 // pred_fallthru
    _
  %v27 = vld [vmem:[%s0] sm:$0xf]
  %v28 = vld [vmem:[%s0 + $0x4] sm:$0xf]
  %v29 = vld [vmem:[%s0 + $0x8] sm:$0xf]
  %v30 = vld [vmem:[%s0 + $0xc] sm:$0xf]
  %v31 = vld [vmem:[%s0 + $0x10] sm:$0xf]
  %v32 = vld [vmem:[%s0 + $0x14] sm:$0xf]
  %v33 = vld [vmem:[%s0 + $0x18] sm:$0xf]
  %v34 = vld [vmem:[%s0 + $0x1c] sm:$0xf]
  %s35 = smul.u32 0, 128
  %s36 = sshra.s32 %s35, 3
  %s37 = sand.u32 %s35, 7
  %s38 = smul.addr %s36, 4
  %s39 = scalar_lea.vmem %s1, %s38
  %v40 = vld [vmem:[%s39] sm:$0xf]
  %v41 = vld [vmem:[%s39 + $0x4] sm:$0xf]
  %v42 = vld [vmem:[%s39 + $0x8] sm:$0xf]
  %v43 = vld [vmem:[%s39 + $0xc] sm:$0xf]
  %v44 = vld [vmem:[%s39 + $0x10] sm:$0xf]
  %v45 = vld [vmem:[%s39 + $0x14] sm:$0xf]
  %v46 = vld [vmem:[%s39 + $0x18] sm:$0xf]
  %v47 = vld [vmem:[%s39 + $0x1c] sm:$0xf]
  %v48 = vld [vmem:[%s39 + $0x20] sm:$0xf]
  %v49 = vld [vmem:[%s39 + $0x24] sm:$0xf]
  %v50 = vld [vmem:[%s39 + $0x28] sm:$0xf]
  %v51 = vld [vmem:[%s39 + $0x2c] sm:$0xf]
  %v52 = vld [vmem:[%s39 + $0x30] sm:$0xf]
  %v53 = vld [vmem:[%s39 + $0x34] sm:$0xf]
  %v54 = vld [vmem:[%s39 + $0x38] sm:$0xf]
  %v55 = vld [vmem:[%s39 + $0x3c] sm:$0xf]
  %v56 = vld [vmem:[#allocation2] sm:$0xff]
  %v57 = vld [vmem:[#allocation2 + $0x8] sm:$0xff]
  %v58 = vld [vmem:[#allocation2 + $0x10] sm:$0xff]
  %v59 = vld [vmem:[#allocation2 + $0x18] sm:$0xff]
  %v60 = vld [vmem:[#allocation2 + $0x20] sm:$0xff]
  %v61 = vld [vmem:[#allocation2 + $0x28] sm:$0xff]
  %v62 = vld [vmem:[#allocation2 + $0x30] sm:$0xff]
  %v63 = vld [vmem:[#allocation2 + $0x38] sm:$0xff]
  %v72 = vunpack.c.l.b16 %v27
  %v73 = vunpack.c.l.b16 %v28
  %v74 = vunpack.c.l.b16 %v29
  %v75 = vunpack.c.l.b16 %v30
  %v76 = vunpack.c.l.b16 %v31
  %v77 = vunpack.c.l.b16 %v32
  %v78 = vunpack.c.l.b16 %v33
  %v79 = vunpack.c.l.b16 %v34
  %v80 = vpack.c.b16 %v73, %v72
  %v81 = vpack.c.b16 %v75, %v74
  %v82 = vpack.c.b16 %v77, %v76
  %v83 = vpack.c.b16 %v79, %v78
  %v104 = vunpack.c.l.b16 %v40
  %v105 = vunpack.c.l.b16 %v41
  %v106 = vunpack.c.l.b16 %v42
  %v107 = vunpack.c.l.b16 %v43
  %v108 = vunpack.c.l.b16 %v44
  %v109 = vunpack.c.l.b16 %v45
  %v110 = vunpack.c.l.b16 %v46
  %v111 = vunpack.c.l.b16 %v47
  %v112 = vunpack.c.l.b16 %v48
  %v113 = vunpack.c.l.b16 %v49
  %v114 = vunpack.c.l.b16 %v50
  %v115 = vunpack.c.l.b16 %v51
  %v116 = vunpack.c.l.b16 %v52
  %v117 = vunpack.c.l.b16 %v53
  %v118 = vunpack.c.l.b16 %v54
  %v119 = vunpack.c.l.b16 %v55
  %v120 = vpack.c.b16 %v105, %v104
  %v121 = vpack.c.b16 %v107, %v106
  %v122 = vpack.c.b16 %v109, %v108
  %v123 = vpack.c.b16 %v111, %v110
  %v124 = vpack.c.b16 %v113, %v112
  %v125 = vpack.c.b16 %v115, %v114
  %v126 = vpack.c.b16 %v117, %v116
  %v127 = vpack.c.b16 %v119, %v118
  %136 = vmatprep.subr.bf16.mxu0 0
  %137 = vmatpush1.bf16.msra.mxu0 %v120
  %138 = vmatprep.subr.bf16.mxu0 0
  %139 = vmatpush1.bf16.msra.mxu0 %v121
  %140 = vmatprep.subr.bf16.mxu0 0
  %141 = vmatpush1.bf16.msra.mxu0 %v122
  %142 = vmatprep.subr.bf16.mxu0 0
  %143 = vmatpush1.bf16.msra.mxu0 %v123
  %144 = vmatprep.subr.bf16.mxu0 0
  %145 = vmatpush1.bf16.msra.mxu0 %v124
  %146 = vmatprep.subr.bf16.mxu0 0
  %147 = vmatpush1.bf16.msra.mxu0 %v125
  %148 = vmatprep.subr.bf16.mxu0 0
  %149 = vmatpush1.bf16.msra.mxu0 %v126
  %150 = vmatprep.subr.bf16.mxu0 0
  %151 = vmatpush1.bf16.msra.mxu0 %v127
  %152 = vmatprep.subr.bf16.mxu0 0
  %153 = vmatpush1.bf16.msra.mxu0 0
  %154 = vmatprep.subr.bf16.mxu0 0
  %155 = vmatpush1.bf16.msra.mxu0 0
  %156 = vmatprep.subr.bf16.mxu0 0
  %157 = vmatpush1.bf16.msra.mxu0 0
  %158 = vmatprep.subr.bf16.mxu0 0
  %159 = vmatpush1.bf16.msra.mxu0 0
  %160 = vmatprep.subr.bf16.mxu0 0
  %161 = vmatpush1.bf16.msra.mxu0 0
  %162 = vmatprep.subr.bf16.mxu0 0
  %163 = vmatpush1.bf16.msra.mxu0 0
  %164 = vmatprep.subr.bf16.mxu0 0
  %165 = vmatpush1.bf16.msra.mxu0 0
  %166 = vmatprep.subr.bf16.mxu0 0
  %167 = vmatpush1.bf16.msra.mxu0 0
  %168 = vmatprep.mubr.bf16.mxu0 0
  %169 = vmatmul.mubr.bf16.gmra.mrb[0].mxu0 %v80
  %v170 = vpop.f32.mrb[0].mxu0
  %v171 = vadd.f32 0.0, %v170
  %v172 = vpop.f32.mrb[0].mxu0
  %v173 = vpop.f32.mrb[0].mxu0
  %v174 = vadd.f32 0.0, %v173
  %v175 = vpop.f32.mrb[0].mxu0
  %176 = vmatprep.mubr.bf16.mxu0 0
  %177 = vmatmul.mubr.bf16.gmra.mrb[0].mxu0 %v81
  %v178 = vpop.f32.mrb[0].mxu0
  %v179 = vadd.f32 0.0, %v178
  %v180 = vpop.f32.mrb[0].mxu0
  %v181 = vpop.f32.mrb[0].mxu0
  %v182 = vadd.f32 0.0, %v181
  %v183 = vpop.f32.mrb[0].mxu0
  %184 = vmatprep.mubr.bf16.mxu0 0
  %185 = vmatmul.mubr.bf16.gmra.mrb[0].mxu0 %v82
  %v186 = vpop.f32.mrb[0].mxu0
  %v187 = vadd.f32 0.0, %v186
  %v188 = vpop.f32.mrb[0].mxu0
  %v189 = vpop.f32.mrb[0].mxu0
  %v190 = vadd.f32 0.0, %v189
  %v191 = vpop.f32.mrb[0].mxu0
  %192 = vmatprep.mubr.bf16.mxu0 0
  %193 = vmatmul.mubr.bf16.gmra.mrb[0].mxu0 %v83
  %v194 = vpop.f32.mrb[0].mxu0
  %v195 = vadd.f32 0.0, %v194
  %v196 = vpop.f32.mrb[0].mxu0
  %v197 = vpop.f32.mrb[0].mxu0
  %v198 = vadd.f32 0.0, %v197
  %v199 = vpop.f32.mrb[0].mxu0
  %200 = vdwg.mxu0
  %v201 = vadd.f32 %v56, %v171
  %v202 = vadd.f32 %v57, %v174
  %v203 = vadd.f32 %v58, %v179
  %v204 = vadd.f32 %v59, %v182
  %v205 = vadd.f32 %v60, %v187
  %v206 = vadd.f32 %v61, %v190
  %v207 = vadd.f32 %v62, %v195
  %v208 = vadd.f32 %v63, %v198
  %209 = vst [vmem:[#allocation2] sm:$0xff] %v201
  %210 = vst [vmem:[#allocation2 + $0x8] sm:$0xff] %v202
  %211 = vst [vmem:[#allocation2 + $0x10] sm:$0xff] %v203
  %212 = vst [vmem:[#allocation2 + $0x18] sm:$0xff] %v204
  %213 = vst [vmem:[#allocation2 + $0x20] sm:$0xff] %v205
  %214 = vst [vmem:[#allocation2 + $0x28] sm:$0xff] %v206
  %215 = vst [vmem:[#allocation2 + $0x30] sm:$0xff] %v207
  %216 = vst [vmem:[#allocation2 + $0x38] sm:$0xff] %v208
  // Predicated region
  $region18: #{link_forward.1} parent=0 // pred_check
    %p217 = pneg %p15
  $region19: #{link_forward.1} parent=0 // pred_check_branch
    %219 = sbr.rel (%p217) target = $region21
  $region20: #{link_forward.1} parent=0 // pred_region
    %v220 = vld [vmem:[#allocation2] sm:$0xff]
    %v221 = vld [vmem:[#allocation2 + $0x8] sm:$0xff]
    %v222 = vld [vmem:[#allocation2 + $0x10] sm:$0xff]
    %v223 = vld [vmem:[#allocation2 + $0x18] sm:$0xff]
    %v224 = vld [vmem:[#allocation2 + $0x20] sm:$0xff]
    %v225 = vld [vmem:[#allocation2 + $0x28] sm:$0xff]
    %v226 = vld [vmem:[#allocation2 + $0x30] sm:$0xff]
    %v227 = vld [vmem:[#allocation2 + $0x38] sm:$0xff]
    %v228 = vld [vmem:[%s2] sm:$0x1]
    %v230 = vlaneseq
    %v231 = vshrl.u32 %v230, 7
    %v232 = vsub.s32 0, %v231
    %v233 = vrot.slane %v228, %v232
    %v235 = vadd.f32 %v220, %v233
    %v236 = vadd.f32 %v221, %v233
    %v237 = vadd.f32 %v222, %v233
    %v238 = vadd.f32 %v223, %v233
    %v239 = vadd.f32 %v224, %v233
    %v240 = vadd.f32 %v225, %v233
    %v241 = vadd.f32 %v226, %v233
    %v242 = vadd.f32 %v227, %v233
    %243 = vst [vmem:[%s3] sm:$0xff] %v235
    %244 = vst [vmem:[%s3 + $0x8] sm:$0xff] %v236
    %245 = vst [vmem:[%s3 + $0x10] sm:$0xff] %v237
    %246 = vst [vmem:[%s3 + $0x18] sm:$0xff] %v238
    %247 = vst [vmem:[%s3 + $0x20] sm:$0xff] %v239
    %248 = vst [vmem:[%s3 + $0x28] sm:$0xff] %v240
    %249 = vst [vmem:[%s3 + $0x30] sm:$0xff] %v241
    %250 = vst [vmem:[%s3 + $0x38] sm:$0xff] %v242
  $region21: #{link_forward.1} parent=0 // pred_fallthru
    _
  // Predicated region
  $region22: #{link_forward.1} parent=0 // pred_check
    _
  $region23: #{link_forward.1} parent=0 // pred_check_branch
    %252 = sbr.rel (0) target = $region25
  $region24: #{link_forward.1} parent=0 // pred_region
    _
  $region25: #{link_forward.1} parent=0 // pred_fallthru
    _
  // Predicated region
  $region26: #{link_forward.1} parent=0 // pred_check
    _
  $region27: #{link_forward.1} parent=0 // pred_check_branch
    %254 = sbr.rel (0) target = $region29
  $region28: #{link_forward.1} parent=0 // pred_region
    _
  $region29: #{link_forward.1} parent=0 // pred_fallthru
    _

</llo_original>
